<compile_context>
chip_gen: v6e
topology: v6e:2x2x1
jax: 0.10.0
libtpu: 0.0.40
codegen_flags: <defaults>
</compile_context>

<pallas_src>
import functools
from dataclasses import dataclass, field
from typing import Optional

import jax
import jax.numpy as jnp
from jax.experimental import pallas as pl
from jax.experimental.pallas import tpu as pltpu


_LANES = 128
_SUBLANES = 8
_VMEM = pl.BlockSpec(memory_space=pltpu.MemorySpace.VMEM)


def _round_up(n, m):
    return ((n + m - 1) // m) * m


def _slab_layout(n_obs, hid, obs_dim, n_act, act_dim):
    """Row/col offsets of each parameter inside the packed fp32 slab."""
    n_obs_p = _round_up(n_obs, _SUBLANES)
    n_act_p = _round_up(n_act, _SUBLANES)
    hid_p = _round_up(hid, _LANES)
    obs_col_p = _round_up(obs_dim, _LANES)
    act_col_p = _round_up(act_dim, _LANES)
    w2_cols = obs_col_p + act_col_p          # block-diagonal second layer width
    r_b1 = n_obs_p                           # obs_w1 rows: [0, n_obs_p)
    r_w2 = r_b1 + _SUBLANES                  # obs_b1 row block: [r_b1, r_b1+8)
    r_b2 = r_w2 + hid_p + n_act_p            # blockdiag(ow2, aw): [r_w2, r_b2)
    rows = r_b2 + _SUBLANES                  # combined bias row block: [r_b2, r_b2+8)
    cols = max(hid_p, w2_cols)
    return dict(n_obs_p=n_obs_p, n_act_p=n_act_p, hid_p=hid_p,
                obs_col_p=obs_col_p, act_col_p=act_col_p, w2_cols=w2_cols,
                r_b1=r_b1, r_w2=r_w2, r_b2=r_b2, rows=rows, cols=cols)


# ------------------------------ Pallas kernel ------------------------------ #

def _rows_to_lanes(r, dim):
    """(B, W0) value, row i valid in lanes [0, dim), zeros elsewhere
       -> (1, B*dim) row-major flatten (row i lands at lane offset i*dim).

    Uses a strided XLU lane-roll + sublane sum; every output lane receives
    exactly one non-zero contributor, so the result is bit-exact.
    """
    b, w0 = r.shape
    w = max(w0, _round_up(b * dim, _LANES))
    if w > w0:
        r = jnp.concatenate([r, jnp.zeros((b, w - w0), r.dtype)], axis=1)
    rolled = pltpu.roll(r, 0, 1, stride=dim, stride_axis=0)   # row i shifted by i*dim
    flat = jnp.sum(rolled, axis=0, keepdims=True)             # (1, w)
    return flat if w == b * dim else flat[:, 0:b * dim]


def _vrnn_encode_kernel(obs_ref, act_ref, slab_ref, obs_out_ref, act_out_ref, *,
                        n_obs, n_obs_p, n_act, n_act_p, hid_p, obs_col_p, w2_cols,
                        obs_dim, act_dim, r_b1, r_w2, r_b2):
    """Fused VRNN_encoding forward.

    observation encoder:  relu(relu(obs @ W1 + b1) @ W2 + b2)
    action encoder:       relu(act @ W + b)
    Layer 2 + action encoder share one block-diagonal matmul; outputs are
    written pre-flattened as (1, B*encode_dim) lane-dense rows.
    """
    b = obs_ref.shape[0]

    # --- unpack the parameter slab (static, tile-aligned slices; no extra DMA) ---
    w1 = slab_ref[0:n_obs_p, 0:hid_p]                                  # (n_obs_p, hid_p)
    b1 = slab_ref[r_b1:r_b1 + 1, 0:hid_p]                              # (1, hid_p)
    w2c = slab_ref[r_w2:r_w2 + hid_p + n_act_p, 0:w2_cols]             # blockdiag(ow2, aw)
    b2c = slab_ref[r_b2:r_b2 + 1, 0:w2_cols]                           # (1, w2_cols)

    # --- inputs (zero-pad feature dims to the slab's sublane-aligned row counts) ---
    obs = obs_ref[...]
    if n_obs_p != n_obs:
        obs = jnp.concatenate(
            [obs, jnp.zeros((b, n_obs_p - n_obs), jnp.float32)], axis=1)
    act = act_ref[...]
    if n_act_p != n_act:
        act = jnp.concatenate(
            [act, jnp.zeros((b, n_act_p - n_act), jnp.float32)], axis=1)

    # --- layer 1 (observation): relu(obs @ W1 + b1) ---
    h = jnp.maximum(
        jnp.dot(obs, w1, preferred_element_type=jnp.float32) + b1, 0.0)  # (b, hid_p)

    # --- fused layer 2:  [h | act] @ blockdiag(ow2, aw) + [b2 | act_b] ---
    x2 = jnp.concatenate([h, act], axis=1)                               # (b, hid_p+n_act_p)
    y = jnp.maximum(
        jnp.dot(x2, w2c, preferred_element_type=jnp.float32) + b2c, 0.0)  # (b, w2_cols)

    y_obs = y[:, 0:obs_col_p]          # valid lanes [0, obs_dim), zeros elsewhere
    y_act = y[:, obs_col_p:w2_cols]    # valid lanes [0, act_dim), zeros elsewhere

    # --- in-kernel `.view(1, 1, -1)` flatten -> lane-dense outputs ---
    obs_out_ref[...] = _rows_to_lanes(y_obs, obs_dim)
    act_out_ref[...] = _rows_to_lanes(y_act, act_dim)


# ------------------------------ jitted wrapper ------------------------------ #

@functools.partial(
    jax.jit,
    static_argnames=("n_observation", "hidden_dim", "observation_encode_dim",
                     "n_actions", "action_encode_dim"),
)
def vrnn_encoding_fwd(observation, action, slab, *, n_observation, hidden_dim,
                      observation_encode_dim, n_actions, action_encode_dim):
    # `.view(-1, dim)` + dtype glue (fused into the same XLA program).
    obs = observation.reshape(-1, n_observation).astype(jnp.float32)
    act = action.reshape(-1, n_actions).astype(jnp.float32)
    b_obs, b_act = obs.shape[0], act.shape[0]
    if b_obs != b_act:
        # TODO(synk): support mismatched flattened batches by zero-row padding
        # the shorter side to a common B (extra rows scatter past the sliced
        # output and are dropped).
        raise ValueError("observation and action must flatten to the same batch")

    lay = _slab_layout(n_observation, hidden_dim, observation_encode_dim,
                       n_actions, action_encode_dim)

    kernel = functools.partial(
        _vrnn_encode_kernel,
        n_obs=n_observation, n_obs_p=lay["n_obs_p"],
        n_act=n_actions, n_act_p=lay["n_act_p"],
        hid_p=lay["hid_p"], obs_col_p=lay["obs_col_p"], w2_cols=lay["w2_cols"],
        obs_dim=observation_encode_dim, act_dim=action_encode_dim,
        r_b1=lay["r_b1"], r_w2=lay["r_w2"], r_b2=lay["r_b2"])

    flops = (2 * b_obs * lay["n_obs_p"] * lay["hid_p"]
             + 2 * b_obs * (lay["hid_p"] + lay["n_act_p"]) * lay["w2_cols"])
    bytes_accessed = 4 * (slab.size + obs.size + act.size
                          + b_obs * observation_encode_dim
                          + b_act * action_encode_dim)

    enc_obs_flat, enc_act_flat = pl.pallas_call(
        kernel,
        out_shape=(
            jax.ShapeDtypeStruct((1, b_obs * observation_encode_dim), jnp.float32),
            jax.ShapeDtypeStruct((1, b_act * action_encode_dim), jnp.float32)),
        in_specs=[_VMEM, _VMEM, _VMEM],
        out_specs=(_VMEM, _VMEM),
        cost_estimate=pl.CostEstimate(flops=int(flops), transcendentals=0,
                                      bytes_accessed=int(bytes_accessed)),
    )(obs, act, slab)

    # `.view(1, 1, -1)`: only adds leading unit dims -> pure metadata, no copy.
    return enc_obs_flat.reshape(1, 1, -1), enc_act_flat.reshape(1, 1, -1)


# ------------------------------ module wrapper ------------------------------ #

@dataclass
class ObsActEncode:
    observation: jnp.ndarray
    action: jnp.ndarray
    encoded_observation: Optional[jnp.ndarray] = field(default=None)
    encoded_action: Optional[jnp.ndarray] = field(default=None)


class VRNNEncoding:
    """JAX/Pallas port of VRNN_encoding (forward pass only)."""

    def __init__(self, n_observation, hidden_dim, observation_encode_dim,
                 n_actions, action_encode_dim, key):
        self.n_observation = n_observation
        self.hidden_dim = hidden_dim
        self.observation_encode_dim = observation_encode_dim
        self.n_actions = n_actions
        self.action_encode_dim = action_encode_dim

        k1, k2, k3, k4, k5, k6 = jax.random.split(key, 6)

        def init_linear(kw, kb, fan_in, fan_out):
            # PyTorch nn.Linear default init: U(-1/sqrt(fan_in), 1/sqrt(fan_in)),
            # stored pre-transposed as (fan_in, fan_out); bias kept 2-D (1, out).
            bound = 1.0 / float(fan_in) ** 0.5
            w = jax.random.uniform(kw, (fan_in, fan_out), jnp.float32, -bound, bound)
            b = jax.random.uniform(kb, (1, fan_out), jnp.float32, -bound, bound)
            return w, b

        # Real (unpadded) parameters — also used for the reference check.
        self.obs_w1, self.obs_b1 = init_linear(k1, k2, n_observation, hidden_dim)
        self.obs_w2, self.obs_b2 = init_linear(k3, k4, hidden_dim, observation_encode_dim)
        self.act_w, self.act_b = init_linear(k5, k6, n_actions, action_encode_dim)

        # Pack everything into one fp32, tile-aligned parameter slab.
        lay = _slab_layout(n_observation, hidden_dim, observation_encode_dim,
                           n_actions, action_encode_dim)
        slab = jnp.zeros((lay["rows"], lay["cols"]), jnp.float32)
        slab = slab.at[0:n_observation, 0:hidden_dim].set(self.obs_w1)
        slab = slab.at[lay["r_b1"], 0:hidden_dim].set(self.obs_b1[0])
        slab = slab.at[lay["r_w2"]:lay["r_w2"] + hidden_dim,
                       0:observation_encode_dim].set(self.obs_w2)
        slab = slab.at[lay["r_w2"] + lay["hid_p"]:
                       lay["r_w2"] + lay["hid_p"] + n_actions,
                       lay["obs_col_p"]:lay["obs_col_p"] + action_encode_dim].set(self.act_w)
        slab = slab.at[lay["r_b2"], 0:observation_encode_dim].set(self.obs_b2[0])
        slab = slab.at[lay["r_b2"],
                       lay["obs_col_p"]:lay["obs_col_p"] + action_encode_dim].set(self.act_b[0])
        self._slab = slab

    def __call__(self, obs_act: ObsActEncode) -> ObsActEncode:
        enc_obs, enc_act = vrnn_encoding_fwd(
            obs_act.observation, obs_act.action, self._slab,
            n_observation=self.n_observation, hidden_dim=self.hidden_dim,
            observation_encode_dim=self.observation_encode_dim,
            n_actions=self.n_actions, action_encode_dim=self.action_encode_dim)
        obs_act.encoded_observation = enc_obs
        obs_act.encoded_action = enc_act
        return obs_act


# ---------------------------------- main ------------------------------------ #

if __name__ == "__main__":
    # Small, forward-consistent shapes.
    n_observation = 16
    hidden_dim = 32
    observation_encode_dim = 32
    n_actions = 4
    action_encode_dim = 8
    seq = 8  # number of (obs, action) rows flattened by .view(-1, dim)

    key = jax.random.PRNGKey(0)
    k_obs, k_act, k_params = jax.random.split(key, 3)

    observation = jax.random.normal(k_obs, (seq, n_observation), jnp.float32)
    action = jax.random.normal(k_act, (seq, n_actions), jnp.float32)

    module = VRNNEncoding(n_observation, hidden_dim, observation_encode_dim,
                          n_actions, action_encode_dim, k_params)

    obs_act = ObsActEncode(observation=observation, action=action)
    out = module(obs_act)

    jax.block_until_ready(out.encoded_observation)
    jax.block_until_ready(out.encoded_action)

    # Reference check (pure JAX, unpadded weights).
    ref_h = jnp.maximum(observation @ module.obs_w1 + module.obs_b1, 0.0)
    ref_obs = jnp.maximum(ref_h @ module.obs_w2 + module.obs_b2, 0.0).reshape(1, 1, -1)
    ref_act = jnp.maximum(action @ module.act_w + module.act_b, 0.0).reshape(1, 1, -1)

    assert out.encoded_observation.shape == (1, 1, seq * observation_encode_dim)
    assert out.encoded_action.shape == (1, 1, seq * action_encode_dim)
    assert jnp.allclose(out.encoded_observation, ref_obs, atol=1e-5, rtol=1e-5)
    assert jnp.allclose(out.encoded_action, ref_act, atol=1e-5, rtol=1e-5)

    print("KERNEL_OK")
</pallas_src>

<mosaic_0001>
module attributes {stable_mosaic.version = 11 : i64} {
  func.func @_vrnn_encode_kernel(%arg0: memref<8x16xf32, #tpu.memory_space<vmem>>, %arg1: memref<8x4xf32, #tpu.memory_space<vmem>>, %arg2: memref<168x256xf32, #tpu.memory_space<vmem>>, %arg3: memref<1x256xf32, #tpu.memory_space<vmem>>, %arg4: memref<1x64xf32, #tpu.memory_space<vmem>>) attributes {dimension_semantics = [], scalar_prefetch = 0 : i64, scratch_operands = 0 : i64, tpu.core_type = #tpu.core_type<tc>} {
    %c0 = arith.constant 0 : index
    %c0_0 = arith.constant 0 : index
    %0 = vector.load %arg2[%c0, %c0_0] : memref<168x256xf32, #tpu.memory_space<vmem>>, vector<16x128xf32>
    %c16 = arith.constant 16 : index
    %c0_1 = arith.constant 0 : index
    %1 = vector.load %arg2[%c16, %c0_1] : memref<168x256xf32, #tpu.memory_space<vmem>>, vector<1x128xf32>
    %c24 = arith.constant 24 : index
    %c0_2 = arith.constant 0 : index
    %2 = vector.load %arg2[%c24, %c0_2] : memref<168x256xf32, #tpu.memory_space<vmem>>, vector<136x256xf32>
    %c160 = arith.constant 160 : index
    %c0_3 = arith.constant 0 : index
    %3 = vector.load %arg2[%c160, %c0_3] : memref<168x256xf32, #tpu.memory_space<vmem>>, vector<1x256xf32>
    %c0_4 = arith.constant 0 : index
    %c0_5 = arith.constant 0 : index
    %4 = vector.load %arg0[%c0_4, %c0_5] : memref<8x16xf32, #tpu.memory_space<vmem>>, vector<8x16xf32>
    %c0_6 = arith.constant 0 : index
    %c0_7 = arith.constant 0 : index
    %5 = vector.load %arg1[%c0_6, %c0_7] : memref<8x4xf32, #tpu.memory_space<vmem>>, vector<8x4xf32>
    %cst = arith.constant 0.000000e+00 : f32
    %6 = vector.broadcast %cst : f32 to vector<8x4xf32>
    %7 = tpu.concatenate %5, %6 in 1 : vector<8x4xf32>, vector<8x4xf32> -> vector<8x8xf32>
    %cst_8 = arith.constant dense<0.000000e+00> : vector<8x128xf32>
    %8 = tpu.matmul %4, %0, %cst_8 {dimension_numbers = #tpu.dot_dimension_numbers<[1], [0], [0], [1], [0, 0, 1, 1], [], []>} : vector<8x16xf32>, vector<16x128xf32>, vector<8x128xf32> -> vector<8x128xf32>
    %9 = vector.broadcast %1 : vector<1x128xf32> to vector<8x128xf32>
    %10 = arith.addf %8, %9 : vector<8x128xf32>
    %cst_9 = arith.constant 0.000000e+00 : f32
    %11 = vector.broadcast %cst_9 : f32 to vector<8x128xf32>
    %12 = arith.maximumf %10, %11 : vector<8x128xf32>
    %13 = tpu.concatenate %12, %7 in 1 : vector<8x128xf32>, vector<8x8xf32> -> vector<8x136xf32>
    %cst_10 = arith.constant dense<0.000000e+00> : vector<8x256xf32>
    %14 = tpu.matmul %13, %2, %cst_10 {dimension_numbers = #tpu.dot_dimension_numbers<[1], [0], [0], [1], [0, 0, 1, 1], [], []>} : vector<8x136xf32>, vector<136x256xf32>, vector<8x256xf32> -> vector<8x256xf32>
    %15 = vector.broadcast %3 : vector<1x256xf32> to vector<8x256xf32>
    %16 = arith.addf %14, %15 : vector<8x256xf32>
    %cst_11 = arith.constant 0.000000e+00 : f32
    %17 = vector.broadcast %cst_11 : f32 to vector<8x256xf32>
    %18 = arith.maximumf %16, %17 : vector<8x256xf32>
    %19 = vector.extract_strided_slice %18 {offsets = [0, 0], sizes = [8, 128], strides = [1, 1]} : vector<8x256xf32> to vector<8x128xf32>
    %20 = vector.extract_strided_slice %18 {offsets = [0, 128], sizes = [8, 128], strides = [1, 1]} : vector<8x256xf32> to vector<8x128xf32>
    %cst_12 = arith.constant 0.000000e+00 : f32
    %21 = vector.broadcast %cst_12 : f32 to vector<8x128xf32>
    %22 = tpu.concatenate %19, %21 in 1 : vector<8x128xf32>, vector<8x128xf32> -> vector<8x256xf32>
    %c0_i32 = arith.constant 0 : i32
    %23 = tpu.dynamic_rotate %22 by %c0_i32 dim 1 {stride = 32 : si32, stride_dimension = 0 : si32} : vector<8x256xf32>, i32 -> vector<8x256xf32>
    %cst_13 = arith.constant dense<0.000000e+00> : vector<256xf32>
    %24 = vector.multi_reduction <add>, %23, %cst_13 [0] : vector<8x256xf32> to vector<256xf32>
    %25 = vector.shape_cast %24 : vector<256xf32> to vector<1x256xf32>
    %c0_14 = arith.constant 0 : index
    %c0_15 = arith.constant 0 : index
    %26 = vector.load %arg3[%c0_14, %c0_15] : memref<1x256xf32, #tpu.memory_space<vmem>>, vector<1x256xf32>
    tpu.vector_store %arg3[%c0_14, %c0_15], %25 {strides = array<i32>} : memref<1x256xf32, #tpu.memory_space<vmem>>, vector<1x256xf32>,
    %c0_i32_16 = arith.constant 0 : i32
    %27 = tpu.dynamic_rotate %20 by %c0_i32_16 dim 1 {stride = 8 : si32, stride_dimension = 0 : si32} : vector<8x128xf32>, i32 -> vector<8x128xf32>
    %cst_17 = arith.constant dense<0.000000e+00> : vector<128xf32>
    %28 = vector.multi_reduction <add>, %27, %cst_17 [0] : vector<8x128xf32> to vector<128xf32>
    %29 = vector.shape_cast %28 : vector<128xf32> to vector<1x128xf32>
    %30 = vector.extract_strided_slice %29 {offsets = [0, 0], sizes = [1, 64], strides = [1, 1]} : vector<1x128xf32> to vector<1x64xf32>
    %c0_18 = arith.constant 0 : index
    %c0_19 = arith.constant 0 : index
    %31 = vector.load %arg4[%c0_18, %c0_19] : memref<1x64xf32, #tpu.memory_space<vmem>>, vector<1x64xf32>
    tpu.vector_store %arg4[%c0_18, %c0_19], %30 {strides = array<i32>} : memref<1x64xf32, #tpu.memory_space<vmem>>, vector<1x64xf32>,
    return
  }
}

</mosaic_0001>

<llo_original>
// kernel: vrnn_encoding_fwd.1
$region0: #{vrnn_encoding_fwd.1}
  #allocation0 [shape = 'u32[]', space=smem, size = 0x4, offset = 0x4, fixed_abs, tag = 'smem constant byte address 0x4 - core index']
  #allocation1 [shape = 'u32[144,128]{1,0:T(1,128)}', space=vmem, size = 0x12000, scoped, tag = 'internal scratch']
  %s0 = inlined_call_operand.vmem [shape: f32[8,16], index: 0, kind: input, shape index: {}]
  %s1 = inlined_call_operand.vmem [shape: f32[8,4], index: 1, kind: input, shape index: {}]
  %s2 = inlined_call_operand.hbm [shape: f32[168,256], index: 2, kind: input, shape index: {}]
  %s3 = inlined_call_operand.hbm [shape: f32[1,256], index: 3, kind: output, shape index: {0}]
  %s4 = inlined_call_operand.hbm [shape: f32[1,64], index: 4, kind: output, shape index: {1}]
  %5 = xla_tuple %s3, %s4
  %s6 = sld [smem:[#allocation0]]
  $region34: #{vrnn_encoding_fwd.1} parent=0
    _
  %s8 = ssub.s32 1, %s6
  %s9 = scalar_select 0, %s8, %s6
  $region1: #{vrnn_encoding_fwd.1} parent=0
    #allocation2 [shape = 'u8[172032]{0}', space=vmem, size = 0x2a000, scoped, tag = 'input window, operand 2, single buffered']
    #allocation3 [shape = 's32[1]{0}', space=sflag, size = 0x4, scoped, tag = 'scoped memory for vrnn_encoding_fwd.1']
    #allocation4 [shape = 's32[1]{0}', space=sflag, size = 0x4, scoped, tag = 'scoped memory for vrnn_encoding_fwd.1']
    #allocation5 [shape = 'u8[1024]{0}', space=vmem, size = 0x400, scoped, tag = 'output window, operand 0, single buffered']
    #allocation6 [shape = 'u8[512]{0}', space=vmem, size = 0x400, scoped, tag = 'output window, operand 1, single buffered']
    #allocation7 [shape = 's32[1]{0}', space=sflag, size = 0x4, scoped, tag = 'scoped memory for vrnn_encoding_fwd.1']
    %10 = vsyncpa [#allocation3], 0
    %11 = vsyncpa [#allocation4], 0
    %12 = vsyncpa [#allocation7], 0
    // Predicated region
    $region2: #{vrnn_encoding_fwd.1} parent=1 // pred_check
      _
    $region3: #{vrnn_encoding_fwd.1} parent=1 // pred_check_branch
      %14 = sbr.rel (0) target = $region5
    $region4: #{vrnn_encoding_fwd.1} parent=1 // pred_region
      _
    $region5: #{vrnn_encoding_fwd.1} parent=1 // pred_fallthru
      _
    // Predicated region
    $region6: #{vrnn_encoding_fwd.1} parent=1 // pred_check
      _
    $region7: #{vrnn_encoding_fwd.1} parent=1 // pred_check_branch
      %16 = sbr.rel (0) target = $region9
    $region8: #{vrnn_encoding_fwd.1} parent=1 // pred_region
      _
    $region9: #{vrnn_encoding_fwd.1} parent=1 // pred_fallthru
      _
    // Predicated region
    $region10: #{vrnn_encoding_fwd.1} parent=1 // pred_check
      _
    $region11: #{vrnn_encoding_fwd.1} parent=1 // pred_check_branch
      %18 = sbr.rel (0) target = $region13
    $region12: #{vrnn_encoding_fwd.1} parent=1 // pred_region
      %s20 = ssub.s32 5376, 5376
      %21 = vsyncadd [#allocation3], %s20
      %s22 = sshll.u32 [#allocation2], 4
      %s23 = int_to_ptr.vmem [resolvable:$true] %s22
      %28 = dma.hbm_to_vmem [thread:$0]  %s2, 5376, %s23, [#allocation3], 256, 256, 16
    $region13: #{vrnn_encoding_fwd.1} parent=1 // pred_fallthru
      _
    // Predicated region
    $region14: #{vrnn_encoding_fwd.1} parent=1 // pred_check
      _
    $region15: #{vrnn_encoding_fwd.1} parent=1 // pred_check_branch
      %30 = sbr.rel (0) target = $region17
    $region16: #{vrnn_encoding_fwd.1} parent=1 // pred_region
      %31 = dma.done [#allocation3], 5376
    $region17: #{vrnn_encoding_fwd.1} parent=1 // pred_fallthru
      _
    %v32 = vld [vmem:[#allocation2] sm:$0xff]
    %v33 = vld [vmem:[#allocation2 + $0x10] sm:$0xff]
    %v34 = vld [vmem:[#allocation2 + $0x20] ss:$0 sm:$0xff]
    %v35 = vld [vmem:[#allocation2 + $0x30] sm:$0xff]
    %v36 = vld [vmem:[#allocation2 + $0x38] sm:$0xff]
    %v37 = vld [vmem:[#allocation2 + $0x40] sm:$0xff]
    %v38 = vld [vmem:[#allocation2 + $0x48] sm:$0xff]
    %v39 = vld [vmem:[#allocation2 + $0x50] sm:$0xff]
    %v40 = vld [vmem:[#allocation2 + $0x58] sm:$0xff]
    %v41 = vld [vmem:[#allocation2 + $0x60] sm:$0xff]
    %v42 = vld [vmem:[#allocation2 + $0x68] sm:$0xff]
    %v43 = vld [vmem:[#allocation2 + $0x70] sm:$0xff]
    %v44 = vld [vmem:[#allocation2 + $0x78] sm:$0xff]
    %v45 = vld [vmem:[#allocation2 + $0x80] sm:$0xff]
    %v46 = vld [vmem:[#allocation2 + $0x88] sm:$0xff]
    %v47 = vld [vmem:[#allocation2 + $0x90] sm:$0xff]
    %v48 = vld [vmem:[#allocation2 + $0x98] sm:$0xff]
    %v49 = vld [vmem:[#allocation2 + $0xa0] sm:$0xff]
    %v50 = vld [vmem:[#allocation2 + $0xa8] sm:$0xff]
    %v51 = vld [vmem:[#allocation2 + $0xb0] sm:$0xff]
    %v52 = vld [vmem:[#allocation2 + $0xb8] sm:$0xff]
    %v53 = vld [vmem:[#allocation2 + $0xc0] sm:$0xff]
    %v54 = vld [vmem:[#allocation2 + $0xc8] sm:$0xff]
    %v55 = vld [vmem:[#allocation2 + $0xd0] sm:$0xff]
    %v56 = vld [vmem:[#allocation2 + $0xd8] sm:$0xff]
    %v57 = vld [vmem:[#allocation2 + $0xe0] sm:$0xff]
    %v58 = vld [vmem:[#allocation2 + $0xe8] sm:$0xff]
    %v59 = vld [vmem:[#allocation2 + $0xf0] sm:$0xff]
    %v60 = vld [vmem:[#allocation2 + $0xf8] sm:$0xff]
    %v61 = vld [vmem:[#allocation2 + $0x100] sm:$0xff]
    %v62 = vld [vmem:[#allocation2 + $0x108] sm:$0xff]
    %v63 = vld [vmem:[#allocation2 + $0x110] sm:$0xff]
    %v64 = vld [vmem:[#allocation2 + $0x118] sm:$0xff]
    %v65 = vld [vmem:[#allocation2 + $0x120] sm:$0xff]
    %v66 = vld [vmem:[#allocation2 + $0x128] sm:$0xff]
    %v67 = vld [vmem:[#allocation2 + $0x130] sm:$0xff]
    %v68 = vld [vmem:[#allocation2 + $0x138] sm:$0xff]
    %s69 = scalar_lea.vmem [#allocation2], 320
    %v70 = vld [vmem:[%s69] ss:$8 sm:$0x3]
    %v71 = vld [vmem:[%s0] sm:$0xff]
    %v72 = vld [vmem:[%s1] sm:$0xff]
    %vm73 = vcmask 31744
    %v74 = vsel %vm73, %v72, 0.0
    %vm75 = vcmask 130048
    %v77 = vsel %vm75, %v71, 0
    %79 = vmatprep.subr.mxu0 0.0
    %80 = vmatpush1.msra.mxu0 0.0
    %81 = vmatprep.subr.mxu0 0.0
    %82 = vmatpush1.msra.mxu0 0.0
    %83 = vmatprep.subr.mxu0 0.0
    %84 = vmatpush1.msra.mxu0 0.0
    %85 = vmatprep.subr.mxu0 0.0
    %86 = vmatpush1.msra.mxu0 0.0
    %87 = vmatprep.subr.mxu0 0.0
    %88 = vmatpush1.msra.mxu0 0.0
    %89 = vmatprep.subr.mxu0 0.0
    %90 = vmatpush1.msra.mxu0 0.0
    %91 = vmatprep.subr.mxu0 0.0
    %92 = vmatpush1.msra.mxu0 0.0
    %93 = vmatprep.subr.mxu0 0.0
    %94 = vmatpush1.msra.mxu0 0.0
    %95 = vmatprep.subr.mxu0 0.0
    %96 = vmatpush1.msra.mxu0 0.0
    %97 = vmatprep.subr.mxu0 0.0
    %98 = vmatpush1.msra.mxu0 0.0
    %99 = vmatprep.subr.mxu0 0.0
    %100 = vmatpush1.msra.mxu0 0.0
    %101 = vmatprep.subr.mxu0 0.0
    %102 = vmatpush1.msra.mxu0 0.0
    %103 = vmatprep.subr.mxu0 0.0
    %104 = vmatpush1.msra.mxu0 0.0
    %105 = vmatprep.subr.mxu0 0.0
    %106 = vmatpush1.msra.mxu0 0.0
    %107 = vmatprep.subr.mxu0 0.0
    %108 = vmatpush1.msra.mxu0 %v33
    %109 = vmatprep.subr.mxu0 0.0
    %110 = vmatpush1.msra.mxu0 %v32
    %111 = vmatprep.subr.mxu0 0.0
    %112 = vmatpush2.msra.mxu0 0.0
    %113 = vmatprep.subr.mxu0 0.0
    %114 = vmatpush2.msra.mxu0 0.0
    %115 = vmatprep.subr.mxu0 0.0
    %116 = vmatpush2.msra.mxu0 0.0
    %117 = vmatprep.subr.mxu0 0.0
    %118 = vmatpush2.msra.mxu0 0.0
    %119 = vmatprep.subr.mxu0 0.0
    %120 = vmatpush2.msra.mxu0 0.0
    %121 = vmatprep.subr.mxu0 0.0
    %122 = vmatpush2.msra.mxu0 0.0
    %123 = vmatprep.subr.mxu0 0.0
    %124 = vmatpush2.msra.mxu0 0.0
    %125 = vmatprep.subr.mxu0 0.0
    %126 = vmatpush2.msra.mxu0 0.0
    %127 = vmatprep.subr.mxu0 0.0
    %128 = vmatpush2.msra.mxu0 0.0
    %129 = vmatprep.subr.mxu0 0.0
    %130 = vmatpush2.msra.mxu0 0.0
    %131 = vmatprep.subr.mxu0 0.0
    %132 = vmatpush2.msra.mxu0 0.0
    %133 = vmatprep.subr.mxu0 0.0
    %134 = vmatpush2.msra.mxu0 0.0
    %135 = vmatprep.subr.mxu0 0.0
    %136 = vmatpush2.msra.mxu0 0.0
    %137 = vmatprep.subr.mxu0 0.0
    %138 = vmatpush2.msra.mxu0 0.0
    %139 = vmatprep.subr.mxu0 0.0
    %140 = vmatpush2.msra.mxu0 0.0
    %141 = vmatprep.subr.mxu0 0.0
    %142 = vmatpush2.msra.mxu0 0.0
    %143 = vmatprep.mubr.f32.mxu0 0.0
    %144 = vmatmul.mubr.f32.gmra.mxu0 %v77
    %v145 = vpop.f32.mrf.mxu0
    %v146 = vadd.f32 %v34, %v145
    %v147 = vpop.f32.mrf.mxu0
    %148 = vdwg.mxu0
    %v149 = vmax.f32 %v146, 0.0
    %v151 = vlaneseq
    %v152 = vshrl.u32 %v151, 7
    %v153 = vsub.s32 0, %v152
    %v154 = vrot.slane %v70, %v153
    %v155 = vlaneseq
    %v156 = vshrl.u32 %v155, 7
    %v157 = vsub.s32 1, %v156
    %v158 = vrot.slane %v70, %v157
    %vm161 = vcmask 64512
    %v163 = vsel %vm161, %v74, 0
    %165 = vmatprep.subr.mxu0 %v66
    %166 = vmatpush1.msra.mxu0 %v65
    %167 = vmatprep.subr.mxu0 %v64
    %168 = vmatpush1.msra.mxu0 %v63
    %169 = vmatprep.subr.mxu0 %v62
    %170 = vmatpush1.msra.mxu0 %v61
    %171 = vmatprep.subr.mxu0 %v60
    %172 = vmatpush1.msra.mxu0 %v59
    %173 = vmatprep.subr.mxu0 %v58
    %174 = vmatpush1.msra.mxu0 %v57
    %175 = vmatprep.subr.mxu0 %v56
    %176 = vmatpush1.msra.mxu0 %v55
    %177 = vmatprep.subr.mxu0 %v54
    %178 = vmatpush1.msra.mxu0 %v53
    %179 = vmatprep.subr.mxu0 %v52
    %180 = vmatpush1.msra.mxu0 %v51
    %181 = vmatprep.subr.mxu0 %v50
    %182 = vmatpush1.msra.mxu0 %v49
    %183 = vmatprep.subr.mxu0 %v48
    %184 = vmatpush1.msra.mxu0 %v47
    %185 = vmatprep.subr.mxu0 %v46
    %186 = vmatpush1.msra.mxu0 %v45
    %187 = vmatprep.subr.mxu0 %v44
    %188 = vmatpush1.msra.mxu0 %v43
    %189 = vmatprep.subr.mxu0 %v42
    %190 = vmatpush1.msra.mxu0 %v41
    %191 = vmatprep.subr.mxu0 %v40
    %192 = vmatpush1.msra.mxu0 %v39
    %193 = vmatprep.subr.mxu0 %v38
    %194 = vmatpush1.msra.mxu0 %v37
    %195 = vmatprep.subr.mxu0 %v36
    %196 = vmatpush1.msra.mxu0 %v35
    %197 = vmatprep.subr.mxu0 0.0
    %198 = vmatpush2.msra.mxu0 0.0
    %199 = vmatprep.subr.mxu0 0.0
    %200 = vmatpush2.msra.mxu0 0.0
    %201 = vmatprep.subr.mxu0 0.0
    %202 = vmatpush2.msra.mxu0 0.0
    %203 = vmatprep.subr.mxu0 0.0
    %204 = vmatpush2.msra.mxu0 0.0
    %205 = vmatprep.subr.mxu0 0.0
    %206 = vmatpush2.msra.mxu0 0.0
    %207 = vmatprep.subr.mxu0 0.0
    %208 = vmatpush2.msra.mxu0 0.0
    %209 = vmatprep.subr.mxu0 0.0
    %210 = vmatpush2.msra.mxu0 0.0
    %211 = vmatprep.subr.mxu0 0.0
    %212 = vmatpush2.msra.mxu0 0.0
    %213 = vmatprep.subr.mxu0 0.0
    %214 = vmatpush2.msra.mxu0 0.0
    %215 = vmatprep.subr.mxu0 0.0
    %216 = vmatpush2.msra.mxu0 0.0
    %217 = vmatprep.subr.mxu0 0.0
    %218 = vmatpush2.msra.mxu0 0.0
    %219 = vmatprep.subr.mxu0 0.0
    %220 = vmatpush2.msra.mxu0 0.0
    %221 = vmatprep.subr.mxu0 0.0
    %222 = vmatpush2.msra.mxu0 0.0
    %223 = vmatprep.subr.mxu0 0.0
    %224 = vmatpush2.msra.mxu0 0.0
    %225 = vmatprep.subr.mxu0 0.0
    %226 = vmatpush2.msra.mxu0 0.0
    %227 = vmatprep.subr.mxu0 %v68
    %228 = vmatpush2.msra.mxu0 %v67
    %229 = vmatprep.mubr.f32.mxu0 %v163
    %230 = vmatmul.mubr.f32.gmra.mxu0 %v149
    %v231 = vpop.f32.mrf.mxu0
    %v232 = vadd.f32 %v154, %v231
    %v233 = vpop.f32.mrf.mxu0
    %v234 = vadd.f32 %v158, %v233
    %235 = vdwg.mxu0
    %v236 = vmax.f32 %v232, 0.0
    %v237 = vmax.f32 %v234, 0.0
    %v238 = vrot.slane %v236, 4
    %v239 = vadd.f32 %v236, %v238
    %v240 = vrot.slane %v239, 2
    %v241 = vadd.f32 %v239, %v240
    %v242 = vrot.slane %v241, 1
    %v243 = vadd.f32 %v241, %v242
    %v246 = vcombine.low %v243, 0.0
    %v248 = vunpack.c.l.s4 1966171168
    %v249 = vunpack.c.0.s8 %v248
    %v250 = vlaneseq
    %v251 = vshrl.u32 %v250, 7
    %v252 = vsub.s32 %v249, %v251
    %v253 = vrot.slane %v246, %v252
    %v255 = vunpack.c.l.s4 1966171168
    %v256 = vunpack.c.0.s8 %v255
    %v257 = vlaneseq
    %v258 = vshrl.u32 %v257, 7
    %v259 = vsub.s32 %v256, %v258
    %v260 = vrot.slane %v253, %v259
    %v262 = vlaneseq
    %vm263 = vcmp.ge.s32.totalorder %v262, 0
    %vm264 = vcmp.lt.s32.totalorder %v262, 256
    %vm265 = vmand %vm263, %vm264
    %266 = vst.msk [vmem:[#allocation5] sm:$0x3] %vm265, %v260
    %v267 = vrot.slane %v237, 4
    %v268 = vadd.f32 %v237, %v267
    %v269 = vrot.slane %v268, 2
    %v270 = vadd.f32 %v268, %v269
    %v271 = vrot.slane %v270, 1
    %v272 = vadd.f32 %v270, %v271
    %vm273 = vcmask 516096
    %274 = vst.msk [vmem:[#allocation6] sm:$0x1] %vm273, %v272
    // Predicated region
    $region18: #{vrnn_encoding_fwd.1} parent=1 // pred_check
      _
    $region19: #{vrnn_encoding_fwd.1} parent=1 // pred_check_branch
      %276 = sbr.rel (0) target = $region21
    $region20: #{vrnn_encoding_fwd.1} parent=1 // pred_region
      %s278 = ssub.s32 32, 32
      %279 = vsyncadd [#allocation4], %s278
      %s281 = sshll.u32 [#allocation5], 4
      %s282 = int_to_ptr.vmem [resolvable:$true] %s281
      %284 = dma.vmem_to_hbm [thread:$0]  %s282, 32, %s3, [#allocation4]
    $region21: #{vrnn_encoding_fwd.1} parent=1 // pred_fallthru
      _
    // Predicated region
    $region22: #{vrnn_encoding_fwd.1} parent=1 // pred_check
      _
    $region23: #{vrnn_encoding_fwd.1} parent=1 // pred_check_branch
      %286 = sbr.rel (0) target = $region25
    $region24: #{vrnn_encoding_fwd.1} parent=1 // pred_region
      %s288 = ssub.s32 16, 16
      %289 = vsyncadd [#allocation7], %s288
      %s291 = sshll.u32 [#allocation6], 4
      %s292 = int_to_ptr.vmem [resolvable:$true] %s291
      %294 = dma.vmem_to_hbm [thread:$0]  %s292, 16, %s4, [#allocation7]
    $region25: #{vrnn_encoding_fwd.1} parent=1 // pred_fallthru
      _
    // Predicated region
    $region26: #{vrnn_encoding_fwd.1} parent=1 // pred_check
      _
    $region27: #{vrnn_encoding_fwd.1} parent=1 // pred_check_branch
      %296 = sbr.rel (0) target = $region29
    $region28: #{vrnn_encoding_fwd.1} parent=1 // pred_region
      %297 = dma.done [#allocation4], 32
    $region29: #{vrnn_encoding_fwd.1} parent=1 // pred_fallthru
      _
    // Predicated region
    $region30: #{vrnn_encoding_fwd.1} parent=1 // pred_check
      _
    $region31: #{vrnn_encoding_fwd.1} parent=1 // pred_check_branch
      %299 = sbr.rel (0) target = $region33
    $region32: #{vrnn_encoding_fwd.1} parent=1 // pred_region
      %300 = dma.done [#allocation7], 16
    $region33: #{vrnn_encoding_fwd.1} parent=1 // pred_fallthru
      _
    %301 = vsyncpa [#allocation3], 1
    %302 = vsyncpa [#allocation4], 1
    %303 = vsyncpa [#allocation7], 1

</llo_original>
